<compile_context>
chip_gen: v7x
topology: tpu7x:2x2x1
jax: 0.10.0
libtpu: 0.0.40
codegen_flags: <defaults>
</compile_context>

<pallas_src>
import functools

import numpy as np
import jax
import jax.numpy as jnp
from jax import lax
from jax.experimental import pallas as pl
from jax.experimental.pallas import tpu as pltpu


def _round_up(n, m):
    return ((n + m - 1) // m) * m


def _epilogue_layout(h):
    """Row offsets of [W_e^T | b_e | W_2^T | b_2] inside the epilogue slab,
    each section aligned to an 8-row (sublane-tile) boundary."""
    hp8 = _round_up(h, 8)
    off_we = 0
    off_be = hp8
    off_w2 = hp8 + 8
    off_b2 = hp8 + 8 + hp8
    n_rows = off_b2 + 8
    return off_we, off_be, off_w2, off_b2, n_rows


def lstm_mlp_kernel(x_ref, rslab_ref, eslab_ref, out_ref):
    """Full LSTM recurrence + two Linear layers, all resident in VMEM.

    x_ref    : (T, D_in)            input sequence (batch=1 squeezed)
    rslab_ref: (pad(D_in)+pad(H)+1, 4H)
               rows [0:D_in]        = W_ih^T, gate cols [i,f,o,g], i/f/o *0.5
               rows [pad:pad+H]     = W_hh^T, same layout/scaling
               last row             = b_ih + b_hh, same layout/scaling
    eslab_ref: (2*pad(H)+16, 128)   zero-padded [W_e^T | b_e | W_2^T | b_2]
    out_ref  : (1, D_out)           y_pred[-1] (final squeeze in wrapper)
    """
    T, D_in = x_ref.shape
    H = rslab_ref.shape[1] // 4
    d_out = out_ref.shape[1]

    off_whh = _round_up(D_in, 8)
    off_b = off_whh + _round_up(H, 8)

    wih = rslab_ref[0:D_in, :]               # (D_in, 4H), pre-scaled i/f/o cols
    whh = rslab_ref[off_whh:off_whh + H, :]  # (H, 4H)
    b = rslab_ref[off_b:off_b + 1, :]        # (1, 4H)

    # Hoisted input projection: one well-shaped matmul for all timesteps.
    xw = jnp.dot(x_ref[...], wih, preferred_element_type=jnp.float32) + b  # (T,4H)
    # Pre-extract per-step rows (independent of h -> off the critical chain).
    xw_rows = [xw[t:t + 1, :] for t in range(T)]

    h = jnp.zeros((1, H), jnp.float32)
    c = jnp.zeros((1, H), jnp.float32)

    # Fully unrolled recurrence (T is static). Per serial step: one (1,H)@(H,4H)
    # MXU push, ONE tanh over the full gates vreg, one tanh(c), VPU fix-ups.
    for t in range(T):
        gates = xw_rows[t] + jnp.dot(h, whh, preferred_element_type=jnp.float32)
        tt = jnp.tanh(gates)          # single EUP push over (1, 4H)
        sg = 0.5 + 0.5 * tt           # == sigmoid of the un-halved i/f/o pre-acts
        i_g = sg[:, 0:H]
        f_g = sg[:, H:2 * H]
        o_g = sg[:, 2 * H:3 * H]
        g_g = tt[:, 3 * H:4 * H]      # g gate columns were NOT pre-scaled
        c = f_g * c + i_g * g_g
        h = o_g * jnp.tanh(c)

    # Epilogue: out = layer_2(relu(extra_linear(h_T))). Weights are zero-padded
    # to the slab's 128-lane width, so padded lanes contribute exactly 0.
    off_we, off_be, off_w2, off_b2, _ = _epilogue_layout(H)
    we = eslab_ref[off_we:off_we + H, :]
    be = eslab_ref[off_be:off_be + 1, :]
    w2 = eslab_ref[off_w2:off_w2 + H, :]
    b2 = eslab_ref[off_b2:off_b2 + 1, :]

    z = jnp.dot(h, we, preferred_element_type=jnp.float32) + be
    z = jnp.maximum(z, 0.0)
    y = jnp.dot(z[:, 0:H], w2, preferred_element_type=jnp.float32) + b2
    out_ref[...] = y[:, 0:d_out]


def _reorder_gate_cols(w_t, h):
    """Reorder trailing-dim gate blocks from PyTorch [i, f, g, o] to [i, f, o, g]."""
    return jnp.concatenate(
        [w_t[..., 0:2 * h], w_t[..., 3 * h:4 * h], w_t[..., 2 * h:3 * h]], axis=-1)


def init_params(key, d_in, h, d_out):
    ks = jax.random.split(key, 8)
    s_lstm = 1.0 / np.sqrt(h)
    # PyTorch nn.LSTM weights: W_ih (4H, D_in), W_hh (4H, H), gate order i,f,g,o
    w_ih = jax.random.uniform(ks[0], (4 * h, d_in), jnp.float32, -s_lstm, s_lstm)
    w_hh = jax.random.uniform(ks[1], (4 * h, h), jnp.float32, -s_lstm, s_lstm)
    b_ih = jax.random.uniform(ks[2], (4 * h,), jnp.float32, -s_lstm, s_lstm)
    b_hh = jax.random.uniform(ks[3], (4 * h,), jnp.float32, -s_lstm, s_lstm)
    s_e = 1.0 / np.sqrt(h)
    w_e = jax.random.uniform(ks[4], (h, h), jnp.float32, -s_e, s_e)
    b_e = jax.random.uniform(ks[5], (h,), jnp.float32, -s_e, s_e)
    w_2 = jax.random.uniform(ks[6], (d_out, h), jnp.float32, -s_e, s_e)
    b_2 = jax.random.uniform(ks[7], (d_out,), jnp.float32, -s_e, s_e)
    return dict(w_ih=w_ih, w_hh=w_hh, b_ih=b_ih, b_hh=b_hh,
                w_e=w_e, b_e=b_e, w_2=w_2, b_2=b_2)


def prepare_params(params):
    """One-time packing of the 8 PyTorch tensors into 2 lane-dense VMEM slabs."""
    w_ih, w_hh = params["w_ih"], params["w_hh"]
    h = w_hh.shape[1]
    d_in = w_ih.shape[1]
    d_out = params["w_2"].shape[0]

    # Transpose + reorder gate columns [i,f,g,o] -> [i,f,o,g].
    wih_t = _reorder_gate_cols(w_ih.T, h)                                  # (D_in, 4H)
    whh_t = _reorder_gate_cols(w_hh.T, h)                                  # (H, 4H)
    b = _reorder_gate_cols((params["b_ih"] + params["b_hh"]).reshape(1, 4 * h), h)
    # Scale i/f/o columns by 0.5 (exact) so sigmoid(x) == 0.5 + 0.5*tanh(pre-act).
    scale = jnp.concatenate([jnp.full((3 * h,), 0.5, jnp.float32),
                             jnp.ones((h,), jnp.float32)])
    wih_t, whh_t, b = wih_t * scale, whh_t * scale, b * scale

    off_whh = _round_up(d_in, 8)
    off_b = off_whh + _round_up(h, 8)
    rslab = jnp.zeros((off_b + 1, 4 * h), jnp.float32)
    rslab = rslab.at[0:d_in, :].set(wih_t)
    rslab = rslab.at[off_whh:off_whh + h, :].set(whh_t)
    rslab = rslab.at[off_b:off_b + 1, :].set(b)

    off_we, off_be, off_w2, off_b2, n_rows = _epilogue_layout(h)
    epi_w = _round_up(max(h, d_out), 128)
    eslab = jnp.zeros((n_rows, epi_w), jnp.float32)
    eslab = eslab.at[off_we:off_we + h, 0:h].set(params["w_e"].T)
    eslab = eslab.at[off_be, 0:h].set(params["b_e"])
    eslab = eslab.at[off_w2:off_w2 + h, 0:d_out].set(params["w_2"].T)
    eslab = eslab.at[off_b2, 0:d_out].set(params["b_2"])

    return dict(rslab=rslab, eslab=eslab), d_out


@functools.partial(jax.jit, static_argnums=(3,))
def recurrent_net_forward(x, rslab, eslab, d_out):
    """x: (T, 1, D_in) float32 (PyTorch LSTM seq-major, batch=1).
    Returns y_pred[-1].squeeze() -> shape (D_out,)."""
    T, B, d_in = x.shape
    assert B == 1, "module's hidden state (1,1,H) implies batch=1"
    x2 = x.reshape(T, d_in)

    vmem = pl.BlockSpec(memory_space=pltpu.MemorySpace.VMEM)
    out = pl.pallas_call(
        lstm_mlp_kernel,
        out_shape=jax.ShapeDtypeStruct((1, d_out), jnp.float32),
        in_specs=[vmem, vmem, vmem],
        out_specs=vmem,
    )(x2, rslab, eslab)
    return out.reshape(d_out)


def reference_forward(x, params):
    """Pure-JAX replica of the PyTorch module's forward (for validation)."""
    T, B, d_in = x.shape
    h_dim = params["w_hh"].shape[1]
    h = jnp.zeros((B, h_dim), jnp.float32)
    c = jnp.zeros((B, h_dim), jnp.float32)
    outs = []
    for t in range(T):
        gates = (x[t] @ params["w_ih"].T + params["b_ih"]
                 + h @ params["w_hh"].T + params["b_hh"])
        i = jax.nn.sigmoid(gates[:, 0:h_dim])
        f = jax.nn.sigmoid(gates[:, h_dim:2 * h_dim])
        g = jnp.tanh(gates[:, 2 * h_dim:3 * h_dim])
        o = jax.nn.sigmoid(gates[:, 3 * h_dim:4 * h_dim])
        c = f * c + i * g
        h = o * jnp.tanh(c)
        outs.append(h)
    out = jnp.stack(outs, axis=0)                          # (T, 1, H)
    out = out @ params["w_e"].T + params["b_e"]            # extra_linear_layer
    h_relu = jnp.clip(out, 0.0, None)
    out = h_relu @ params["w_2"].T + params["b_2"]         # layer_2
    return out[-1].squeeze()


if __name__ == "__main__":
    T, D_in, H, D_out = 8, 8, 32, 4
    key = jax.random.PRNGKey(0)
    k_x, k_p = jax.random.split(key)
    x = jax.random.normal(k_x, (T, 1, D_in), jnp.float32)
    params = init_params(k_p, D_in, H, D_out)

    packed, d_out = prepare_params(params)   # one-time weight packing

    y = recurrent_net_forward(x, packed["rslab"], packed["eslab"], d_out)
    y = jax.block_until_ready(y)

    y_ref = reference_forward(x, params)
    np.testing.assert_allclose(np.asarray(y), np.asarray(y_ref), rtol=1e-5, atol=1e-5)
    print("KERNEL_OK")
</pallas_src>

<mosaic_0001>
module attributes {stable_mosaic.version = 11 : i64} {
  func.func @lstm_mlp_kernel(%arg0: memref<8x8xf32, #tpu.memory_space<vmem>>, %arg1: memref<41x128xf32, #tpu.memory_space<vmem>>, %arg2: memref<80x128xf32, #tpu.memory_space<vmem>>, %arg3: memref<1x4xf32, #tpu.memory_space<vmem>>) attributes {dimension_semantics = [], scalar_prefetch = 0 : i64, scratch_operands = 0 : i64, tpu.core_type = #tpu.core_type<tc>} {
    %c0 = arith.constant 0 : index
    %c0_0 = arith.constant 0 : index
    %0 = vector.load %arg1[%c0, %c0_0] : memref<41x128xf32, #tpu.memory_space<vmem>>, vector<8x128xf32>
    %c8 = arith.constant 8 : index
    %c0_1 = arith.constant 0 : index
    %1 = vector.load %arg1[%c8, %c0_1] : memref<41x128xf32, #tpu.memory_space<vmem>>, vector<32x128xf32>
    %c40 = arith.constant 40 : index
    %c0_2 = arith.constant 0 : index
    %2 = vector.load %arg1[%c40, %c0_2] : memref<41x128xf32, #tpu.memory_space<vmem>>, vector<1x128xf32>
    %c0_3 = arith.constant 0 : index
    %c0_4 = arith.constant 0 : index
    %3 = vector.load %arg0[%c0_3, %c0_4] : memref<8x8xf32, #tpu.memory_space<vmem>>, vector<8x8xf32>
    %cst = arith.constant dense<0.000000e+00> : vector<8x128xf32>
    %4 = tpu.matmul %3, %0, %cst {dimension_numbers = #tpu.dot_dimension_numbers<[1], [0], [0], [1], [0, 0, 1, 1], [], []>} : vector<8x8xf32>, vector<8x128xf32>, vector<8x128xf32> -> vector<8x128xf32>
    %5 = vector.broadcast %2 : vector<1x128xf32> to vector<8x128xf32>
    %6 = arith.addf %4, %5 : vector<8x128xf32>
    %7 = vector.extract_strided_slice %6 {offsets = [0, 0], sizes = [1, 128], strides = [1, 1]} : vector<8x128xf32> to vector<1x128xf32>
    %8 = vector.extract_strided_slice %6 {offsets = [1, 0], sizes = [1, 128], strides = [1, 1]} : vector<8x128xf32> to vector<1x128xf32>
    %9 = vector.extract_strided_slice %6 {offsets = [2, 0], sizes = [1, 128], strides = [1, 1]} : vector<8x128xf32> to vector<1x128xf32>
    %10 = vector.extract_strided_slice %6 {offsets = [3, 0], sizes = [1, 128], strides = [1, 1]} : vector<8x128xf32> to vector<1x128xf32>
    %11 = vector.extract_strided_slice %6 {offsets = [4, 0], sizes = [1, 128], strides = [1, 1]} : vector<8x128xf32> to vector<1x128xf32>
    %12 = vector.extract_strided_slice %6 {offsets = [5, 0], sizes = [1, 128], strides = [1, 1]} : vector<8x128xf32> to vector<1x128xf32>
    %13 = vector.extract_strided_slice %6 {offsets = [6, 0], sizes = [1, 128], strides = [1, 1]} : vector<8x128xf32> to vector<1x128xf32>
    %14 = vector.extract_strided_slice %6 {offsets = [7, 0], sizes = [1, 128], strides = [1, 1]} : vector<8x128xf32> to vector<1x128xf32>
    %cst_5 = arith.constant 0.000000e+00 : f32
    %15 = vector.broadcast %cst_5 : f32 to vector<1x32xf32>
    %cst_6 = arith.constant 0.000000e+00 : f32
    %16 = vector.broadcast %cst_6 : f32 to vector<1x32xf32>
    %cst_7 = arith.constant dense<0.000000e+00> : vector<1x128xf32>
    %17 = tpu.matmul %15, %1, %cst_7 {dimension_numbers = #tpu.dot_dimension_numbers<[1], [0], [0], [1], [0, 0, 1, 1], [], []>} : vector<1x32xf32>, vector<32x128xf32>, vector<1x128xf32> -> vector<1x128xf32>
    %18 = arith.addf %7, %17 : vector<1x128xf32>
    %19 = math.tanh %18 : vector<1x128xf32>
    %cst_8 = arith.constant 5.000000e-01 : f32
    %20 = vector.broadcast %cst_8 : f32 to vector<1x128xf32>
    %21 = arith.mulf %20, %19 : vector<1x128xf32>
    %cst_9 = arith.constant 5.000000e-01 : f32
    %22 = vector.broadcast %cst_9 : f32 to vector<1x128xf32>
    %23 = arith.addf %22, %21 : vector<1x128xf32>
    %24 = vector.extract_strided_slice %23 {offsets = [0, 0], sizes = [1, 32], strides = [1, 1]} : vector<1x128xf32> to vector<1x32xf32>
    %25 = vector.extract_strided_slice %23 {offsets = [0, 32], sizes = [1, 32], strides = [1, 1]} : vector<1x128xf32> to vector<1x32xf32>
    %26 = vector.extract_strided_slice %23 {offsets = [0, 64], sizes = [1, 32], strides = [1, 1]} : vector<1x128xf32> to vector<1x32xf32>
    %27 = vector.extract_strided_slice %19 {offsets = [0, 96], sizes = [1, 32], strides = [1, 1]} : vector<1x128xf32> to vector<1x32xf32>
    %28 = arith.mulf %25, %16 : vector<1x32xf32>
    %29 = arith.mulf %24, %27 : vector<1x32xf32>
    %30 = arith.addf %28, %29 : vector<1x32xf32>
    %31 = math.tanh %30 : vector<1x32xf32>
    %32 = arith.mulf %26, %31 : vector<1x32xf32>
    %cst_10 = arith.constant dense<0.000000e+00> : vector<1x128xf32>
    %33 = tpu.matmul %32, %1, %cst_10 {dimension_numbers = #tpu.dot_dimension_numbers<[1], [0], [0], [1], [0, 0, 1, 1], [], []>} : vector<1x32xf32>, vector<32x128xf32>, vector<1x128xf32> -> vector<1x128xf32>
    %34 = arith.addf %8, %33 : vector<1x128xf32>
    %35 = math.tanh %34 : vector<1x128xf32>
    %cst_11 = arith.constant 5.000000e-01 : f32
    %36 = vector.broadcast %cst_11 : f32 to vector<1x128xf32>
    %37 = arith.mulf %36, %35 : vector<1x128xf32>
    %cst_12 = arith.constant 5.000000e-01 : f32
    %38 = vector.broadcast %cst_12 : f32 to vector<1x128xf32>
    %39 = arith.addf %38, %37 : vector<1x128xf32>
    %40 = vector.extract_strided_slice %39 {offsets = [0, 0], sizes = [1, 32], strides = [1, 1]} : vector<1x128xf32> to vector<1x32xf32>
    %41 = vector.extract_strided_slice %39 {offsets = [0, 32], sizes = [1, 32], strides = [1, 1]} : vector<1x128xf32> to vector<1x32xf32>
    %42 = vector.extract_strided_slice %39 {offsets = [0, 64], sizes = [1, 32], strides = [1, 1]} : vector<1x128xf32> to vector<1x32xf32>
    %43 = vector.extract_strided_slice %35 {offsets = [0, 96], sizes = [1, 32], strides = [1, 1]} : vector<1x128xf32> to vector<1x32xf32>
    %44 = arith.mulf %41, %30 : vector<1x32xf32>
    %45 = arith.mulf %40, %43 : vector<1x32xf32>
    %46 = arith.addf %44, %45 : vector<1x32xf32>
    %47 = math.tanh %46 : vector<1x32xf32>
    %48 = arith.mulf %42, %47 : vector<1x32xf32>
    %cst_13 = arith.constant dense<0.000000e+00> : vector<1x128xf32>
    %49 = tpu.matmul %48, %1, %cst_13 {dimension_numbers = #tpu.dot_dimension_numbers<[1], [0], [0], [1], [0, 0, 1, 1], [], []>} : vector<1x32xf32>, vector<32x128xf32>, vector<1x128xf32> -> vector<1x128xf32>
    %50 = arith.addf %9, %49 : vector<1x128xf32>
    %51 = math.tanh %50 : vector<1x128xf32>
    %cst_14 = arith.constant 5.000000e-01 : f32
    %52 = vector.broadcast %cst_14 : f32 to vector<1x128xf32>
    %53 = arith.mulf %52, %51 : vector<1x128xf32>
    %cst_15 = arith.constant 5.000000e-01 : f32
    %54 = vector.broadcast %cst_15 : f32 to vector<1x128xf32>
    %55 = arith.addf %54, %53 : vector<1x128xf32>
    %56 = vector.extract_strided_slice %55 {offsets = [0, 0], sizes = [1, 32], strides = [1, 1]} : vector<1x128xf32> to vector<1x32xf32>
    %57 = vector.extract_strided_slice %55 {offsets = [0, 32], sizes = [1, 32], strides = [1, 1]} : vector<1x128xf32> to vector<1x32xf32>
    %58 = vector.extract_strided_slice %55 {offsets = [0, 64], sizes = [1, 32], strides = [1, 1]} : vector<1x128xf32> to vector<1x32xf32>
    %59 = vector.extract_strided_slice %51 {offsets = [0, 96], sizes = [1, 32], strides = [1, 1]} : vector<1x128xf32> to vector<1x32xf32>
    %60 = arith.mulf %57, %46 : vector<1x32xf32>
    %61 = arith.mulf %56, %59 : vector<1x32xf32>
    %62 = arith.addf %60, %61 : vector<1x32xf32>
    %63 = math.tanh %62 : vector<1x32xf32>
    %64 = arith.mulf %58, %63 : vector<1x32xf32>
    %cst_16 = arith.constant dense<0.000000e+00> : vector<1x128xf32>
    %65 = tpu.matmul %64, %1, %cst_16 {dimension_numbers = #tpu.dot_dimension_numbers<[1], [0], [0], [1], [0, 0, 1, 1], [], []>} : vector<1x32xf32>, vector<32x128xf32>, vector<1x128xf32> -> vector<1x128xf32>
    %66 = arith.addf %10, %65 : vector<1x128xf32>
    %67 = math.tanh %66 : vector<1x128xf32>
    %cst_17 = arith.constant 5.000000e-01 : f32
    %68 = vector.broadcast %cst_17 : f32 to vector<1x128xf32>
    %69 = arith.mulf %68, %67 : vector<1x128xf32>
    %cst_18 = arith.constant 5.000000e-01 : f32
    %70 = vector.broadcast %cst_18 : f32 to vector<1x128xf32>
    %71 = arith.addf %70, %69 : vector<1x128xf32>
    %72 = vector.extract_strided_slice %71 {offsets = [0, 0], sizes = [1, 32], strides = [1, 1]} : vector<1x128xf32> to vector<1x32xf32>
    %73 = vector.extract_strided_slice %71 {offsets = [0, 32], sizes = [1, 32], strides = [1, 1]} : vector<1x128xf32> to vector<1x32xf32>
    %74 = vector.extract_strided_slice %71 {offsets = [0, 64], sizes = [1, 32], strides = [1, 1]} : vector<1x128xf32> to vector<1x32xf32>
    %75 = vector.extract_strided_slice %67 {offsets = [0, 96], sizes = [1, 32], strides = [1, 1]} : vector<1x128xf32> to vector<1x32xf32>
    %76 = arith.mulf %73, %62 : vector<1x32xf32>
    %77 = arith.mulf %72, %75 : vector<1x32xf32>
    %78 = arith.addf %76, %77 : vector<1x32xf32>
    %79 = math.tanh %78 : vector<1x32xf32>
    %80 = arith.mulf %74, %79 : vector<1x32xf32>
    %cst_19 = arith.constant dense<0.000000e+00> : vector<1x128xf32>
    %81 = tpu.matmul %80, %1, %cst_19 {dimension_numbers = #tpu.dot_dimension_numbers<[1], [0], [0], [1], [0, 0, 1, 1], [], []>} : vector<1x32xf32>, vector<32x128xf32>, vector<1x128xf32> -> vector<1x128xf32>
    %82 = arith.addf %11, %81 : vector<1x128xf32>
    %83 = math.tanh %82 : vector<1x128xf32>
    %cst_20 = arith.constant 5.000000e-01 : f32
    %84 = vector.broadcast %cst_20 : f32 to vector<1x128xf32>
    %85 = arith.mulf %84, %83 : vector<1x128xf32>
    %cst_21 = arith.constant 5.000000e-01 : f32
    %86 = vector.broadcast %cst_21 : f32 to vector<1x128xf32>
    %87 = arith.addf %86, %85 : vector<1x128xf32>
    %88 = vector.extract_strided_slice %87 {offsets = [0, 0], sizes = [1, 32], strides = [1, 1]} : vector<1x128xf32> to vector<1x32xf32>
    %89 = vector.extract_strided_slice %87 {offsets = [0, 32], sizes = [1, 32], strides = [1, 1]} : vector<1x128xf32> to vector<1x32xf32>
    %90 = vector.extract_strided_slice %87 {offsets = [0, 64], sizes = [1, 32], strides = [1, 1]} : vector<1x128xf32> to vector<1x32xf32>
    %91 = vector.extract_strided_slice %83 {offsets = [0, 96], sizes = [1, 32], strides = [1, 1]} : vector<1x128xf32> to vector<1x32xf32>
    %92 = arith.mulf %89, %78 : vector<1x32xf32>
    %93 = arith.mulf %88, %91 : vector<1x32xf32>
    %94 = arith.addf %92, %93 : vector<1x32xf32>
    %95 = math.tanh %94 : vector<1x32xf32>
    %96 = arith.mulf %90, %95 : vector<1x32xf32>
    %cst_22 = arith.constant dense<0.000000e+00> : vector<1x128xf32>
    %97 = tpu.matmul %96, %1, %cst_22 {dimension_numbers = #tpu.dot_dimension_numbers<[1], [0], [0], [1], [0, 0, 1, 1], [], []>} : vector<1x32xf32>, vector<32x128xf32>, vector<1x128xf32> -> vector<1x128xf32>
    %98 = arith.addf %12, %97 : vector<1x128xf32>
    %99 = math.tanh %98 : vector<1x128xf32>
    %cst_23 = arith.constant 5.000000e-01 : f32
    %100 = vector.broadcast %cst_23 : f32 to vector<1x128xf32>
    %101 = arith.mulf %100, %99 : vector<1x128xf32>
    %cst_24 = arith.constant 5.000000e-01 : f32
    %102 = vector.broadcast %cst_24 : f32 to vector<1x128xf32>
    %103 = arith.addf %102, %101 : vector<1x128xf32>
    %104 = vector.extract_strided_slice %103 {offsets = [0, 0], sizes = [1, 32], strides = [1, 1]} : vector<1x128xf32> to vector<1x32xf32>
    %105 = vector.extract_strided_slice %103 {offsets = [0, 32], sizes = [1, 32], strides = [1, 1]} : vector<1x128xf32> to vector<1x32xf32>
    %106 = vector.extract_strided_slice %103 {offsets = [0, 64], sizes = [1, 32], strides = [1, 1]} : vector<1x128xf32> to vector<1x32xf32>
    %107 = vector.extract_strided_slice %99 {offsets = [0, 96], sizes = [1, 32], strides = [1, 1]} : vector<1x128xf32> to vector<1x32xf32>
    %108 = arith.mulf %105, %94 : vector<1x32xf32>
    %109 = arith.mulf %104, %107 : vector<1x32xf32>
    %110 = arith.addf %108, %109 : vector<1x32xf32>
    %111 = math.tanh %110 : vector<1x32xf32>
    %112 = arith.mulf %106, %111 : vector<1x32xf32>
    %cst_25 = arith.constant dense<0.000000e+00> : vector<1x128xf32>
    %113 = tpu.matmul %112, %1, %cst_25 {dimension_numbers = #tpu.dot_dimension_numbers<[1], [0], [0], [1], [0, 0, 1, 1], [], []>} : vector<1x32xf32>, vector<32x128xf32>, vector<1x128xf32> -> vector<1x128xf32>
    %114 = arith.addf %13, %113 : vector<1x128xf32>
    %115 = math.tanh %114 : vector<1x128xf32>
    %cst_26 = arith.constant 5.000000e-01 : f32
    %116 = vector.broadcast %cst_26 : f32 to vector<1x128xf32>
    %117 = arith.mulf %116, %115 : vector<1x128xf32>
    %cst_27 = arith.constant 5.000000e-01 : f32
    %118 = vector.broadcast %cst_27 : f32 to vector<1x128xf32>
    %119 = arith.addf %118, %117 : vector<1x128xf32>
    %120 = vector.extract_strided_slice %119 {offsets = [0, 0], sizes = [1, 32], strides = [1, 1]} : vector<1x128xf32> to vector<1x32xf32>
    %121 = vector.extract_strided_slice %119 {offsets = [0, 32], sizes = [1, 32], strides = [1, 1]} : vector<1x128xf32> to vector<1x32xf32>
    %122 = vector.extract_strided_slice %119 {offsets = [0, 64], sizes = [1, 32], strides = [1, 1]} : vector<1x128xf32> to vector<1x32xf32>
    %123 = vector.extract_strided_slice %115 {offsets = [0, 96], sizes = [1, 32], strides = [1, 1]} : vector<1x128xf32> to vector<1x32xf32>
    %124 = arith.mulf %121, %110 : vector<1x32xf32>
    %125 = arith.mulf %120, %123 : vector<1x32xf32>
    %126 = arith.addf %124, %125 : vector<1x32xf32>
    %127 = math.tanh %126 : vector<1x32xf32>
    %128 = arith.mulf %122, %127 : vector<1x32xf32>
    %cst_28 = arith.constant dense<0.000000e+00> : vector<1x128xf32>
    %129 = tpu.matmul %128, %1, %cst_28 {dimension_numbers = #tpu.dot_dimension_numbers<[1], [0], [0], [1], [0, 0, 1, 1], [], []>} : vector<1x32xf32>, vector<32x128xf32>, vector<1x128xf32> -> vector<1x128xf32>
    %130 = arith.addf %14, %129 : vector<1x128xf32>
    %131 = math.tanh %130 : vector<1x128xf32>
    %cst_29 = arith.constant 5.000000e-01 : f32
    %132 = vector.broadcast %cst_29 : f32 to vector<1x128xf32>
    %133 = arith.mulf %132, %131 : vector<1x128xf32>
    %cst_30 = arith.constant 5.000000e-01 : f32
    %134 = vector.broadcast %cst_30 : f32 to vector<1x128xf32>
    %135 = arith.addf %134, %133 : vector<1x128xf32>
    %136 = vector.extract_strided_slice %135 {offsets = [0, 0], sizes = [1, 32], strides = [1, 1]} : vector<1x128xf32> to vector<1x32xf32>
    %137 = vector.extract_strided_slice %135 {offsets = [0, 32], sizes = [1, 32], strides = [1, 1]} : vector<1x128xf32> to vector<1x32xf32>
    %138 = vector.extract_strided_slice %135 {offsets = [0, 64], sizes = [1, 32], strides = [1, 1]} : vector<1x128xf32> to vector<1x32xf32>
    %139 = vector.extract_strided_slice %131 {offsets = [0, 96], sizes = [1, 32], strides = [1, 1]} : vector<1x128xf32> to vector<1x32xf32>
    %140 = arith.mulf %137, %126 : vector<1x32xf32>
    %141 = arith.mulf %136, %139 : vector<1x32xf32>
    %142 = arith.addf %140, %141 : vector<1x32xf32>
    %143 = math.tanh %142 : vector<1x32xf32>
    %144 = arith.mulf %138, %143 : vector<1x32xf32>
    %c0_31 = arith.constant 0 : index
    %c0_32 = arith.constant 0 : index
    %145 = vector.load %arg2[%c0_31, %c0_32] : memref<80x128xf32, #tpu.memory_space<vmem>>, vector<32x128xf32>
    %c32 = arith.constant 32 : index
    %c0_33 = arith.constant 0 : index
    %146 = vector.load %arg2[%c32, %c0_33] : memref<80x128xf32, #tpu.memory_space<vmem>>, vector<1x128xf32>
    %c40_34 = arith.constant 40 : index
    %c0_35 = arith.constant 0 : index
    %147 = vector.load %arg2[%c40_34, %c0_35] : memref<80x128xf32, #tpu.memory_space<vmem>>, vector<32x128xf32>
    %c72 = arith.constant 72 : index
    %c0_36 = arith.constant 0 : index
    %148 = vector.load %arg2[%c72, %c0_36] : memref<80x128xf32, #tpu.memory_space<vmem>>, vector<1x128xf32>
    %cst_37 = arith.constant dense<0.000000e+00> : vector<1x128xf32>
    %149 = tpu.matmul %144, %145, %cst_37 {dimension_numbers = #tpu.dot_dimension_numbers<[1], [0], [0], [1], [0, 0, 1, 1], [], []>} : vector<1x32xf32>, vector<32x128xf32>, vector<1x128xf32> -> vector<1x128xf32>
    %150 = arith.addf %149, %146 : vector<1x128xf32>
    %cst_38 = arith.constant 0.000000e+00 : f32
    %151 = vector.broadcast %cst_38 : f32 to vector<1x128xf32>
    %152 = arith.maximumf %150, %151 : vector<1x128xf32>
    %153 = vector.extract_strided_slice %152 {offsets = [0, 0], sizes = [1, 32], strides = [1, 1]} : vector<1x128xf32> to vector<1x32xf32>
    %cst_39 = arith.constant dense<0.000000e+00> : vector<1x128xf32>
    %154 = tpu.matmul %153, %147, %cst_39 {dimension_numbers = #tpu.dot_dimension_numbers<[1], [0], [0], [1], [0, 0, 1, 1], [], []>} : vector<1x32xf32>, vector<32x128xf32>, vector<1x128xf32> -> vector<1x128xf32>
    %155 = arith.addf %154, %148 : vector<1x128xf32>
    %156 = vector.extract_strided_slice %155 {offsets = [0, 0], sizes = [1, 4], strides = [1, 1]} : vector<1x128xf32> to vector<1x4xf32>
    %c0_40 = arith.constant 0 : index
    %c0_41 = arith.constant 0 : index
    %157 = vector.load %arg3[%c0_40, %c0_41] : memref<1x4xf32, #tpu.memory_space<vmem>>, vector<1x4xf32>
    tpu.vector_store %arg3[%c0_40, %c0_41], %156 {strides = array<i32>} : memref<1x4xf32, #tpu.memory_space<vmem>>, vector<1x4xf32>,
    return
  }
}

</mosaic_0001>

<llo_original>
// kernel: recurrent_net_forward.1
$region0: #{recurrent_net_forward.1}
  #allocation0 [shape = 'u32[]', space=smem, size = 0x4, offset = 0x4, fixed_abs, tag = 'smem constant byte address 0x4 - core index']
  #allocation1 [shape = 'u32[144,128]{1,0:T(1,128)}', space=vmem, size = 0x12000, scoped, tag = 'internal scratch']
  %s0 = inlined_call_operand.hbm [shape: f32[8,8], index: 0, kind: input, shape index: {}]
  %s1 = inlined_call_operand.hbm [shape: f32[41,128], index: 1, kind: input, shape index: {}]
  %s2 = inlined_call_operand.hbm [shape: f32[80,128], index: 2, kind: input, shape index: {}]
  %s3 = inlined_call_operand.hbm [shape: f32[1,4], index: 3, kind: output, shape index: {}]
  %s4 = sld [smem:[#allocation0]]
  $region34: #{recurrent_net_forward.1} parent=0
    _
  %s6 = ssub.s32 1, %s4
  %s7 = scalar_select 0, %s6, %s4
  $region1: #{recurrent_net_forward.1} parent=0
    #allocation2 [shape = 'u8[4096]{0}', space=vmem, size = 0x1000, scoped, tag = 'input window, operand 0, single buffered']
    #allocation3 [shape = 's32[1]{0}', space=sflag, size = 0x4, scoped, tag = 'scoped memory for recurrent_net_forward.1']
    #allocation4 [shape = 's32[1]{0}', space=sflag, size = 0x4, scoped, tag = 'scoped memory for recurrent_net_forward.1']
    #allocation5 [shape = 'u8[24576]{0}', space=vmem, size = 0x6000, scoped, tag = 'input window, operand 1, single buffered']
    #allocation6 [shape = 's32[1]{0}', space=sflag, size = 0x4, scoped, tag = 'scoped memory for recurrent_net_forward.1']
    #allocation7 [shape = 'u8[40960]{0}', space=vmem, size = 0xa000, scoped, tag = 'input window, operand 2, single buffered']
    #allocation8 [shape = 'u8[512]{0}', space=vmem, size = 0x400, scoped, tag = 'output window, operand 0, single buffered']
    %8 = vsyncpa [#allocation3], 0
    %9 = vsyncpa [#allocation6], 0
    %10 = vsyncpa [#allocation4], 0
    // Predicated region
    $region2: #{recurrent_net_forward.1} parent=1 // pred_check
      _
    $region3: #{recurrent_net_forward.1} parent=1 // pred_check_branch
      %12 = sbr.rel (0) target = $region5
    $region4: #{recurrent_net_forward.1} parent=1 // pred_region
      %s14 = ssub.s32 128, 128
      %15 = vsyncadd [#allocation3], %s14
      %s17 = sshll.u32 [#allocation2], 4
      %s18 = int_to_ptr.vmem [resolvable:$true] %s17
      %20 = dma.hbm_to_vmem [thread:$0]  %s0, 128, %s18, [#allocation3]
    $region5: #{recurrent_net_forward.1} parent=1 // pred_fallthru
      _
    // Predicated region
    $region6: #{recurrent_net_forward.1} parent=1 // pred_check
      _
    $region7: #{recurrent_net_forward.1} parent=1 // pred_check_branch
      %22 = sbr.rel (0) target = $region9
    $region8: #{recurrent_net_forward.1} parent=1 // pred_region
      %s24 = ssub.s32 768, 768
      %25 = vsyncadd [#allocation6], %s24
      %s26 = sshll.u32 [#allocation5], 4
      %s27 = int_to_ptr.vmem [resolvable:$true] %s26
      %32 = dma.hbm_to_vmem [thread:$0]  %s1, 768, %s27, [#allocation6], 128, 128, 8
    $region9: #{recurrent_net_forward.1} parent=1 // pred_fallthru
      _
    // Predicated region
    $region10: #{recurrent_net_forward.1} parent=1 // pred_check
      _
    $region11: #{recurrent_net_forward.1} parent=1 // pred_check_branch
      %34 = sbr.rel (0) target = $region13
    $region12: #{recurrent_net_forward.1} parent=1 // pred_region
      %s36 = ssub.s32 1280, 1280
      %37 = vsyncadd [#allocation6], %s36
      %s38 = sshll.u32 [#allocation7], 4
      %s39 = int_to_ptr.vmem [resolvable:$true] %s38
      %44 = dma.hbm_to_vmem [thread:$0]  %s2, 1280, %s39, [#allocation6], 128, 128, 8
    $region13: #{recurrent_net_forward.1} parent=1 // pred_fallthru
      _
    // Predicated region
    $region14: #{recurrent_net_forward.1} parent=1 // pred_check
      _
    $region15: #{recurrent_net_forward.1} parent=1 // pred_check_branch
      %46 = sbr.rel (0) target = $region17
    $region16: #{recurrent_net_forward.1} parent=1 // pred_region
      %47 = dma.done [#allocation3], 128
    $region17: #{recurrent_net_forward.1} parent=1 // pred_fallthru
      _
    // Predicated region
    $region18: #{recurrent_net_forward.1} parent=1 // pred_check
      _
    $region19: #{recurrent_net_forward.1} parent=1 // pred_check_branch
      %49 = sbr.rel (0) target = $region21
    $region20: #{recurrent_net_forward.1} parent=1 // pred_region
      %50 = dma.done [#allocation6], 768
    $region21: #{recurrent_net_forward.1} parent=1 // pred_fallthru
      _
    // Predicated region
    $region22: #{recurrent_net_forward.1} parent=1 // pred_check
      _
    $region23: #{recurrent_net_forward.1} parent=1 // pred_check_branch
      %52 = sbr.rel (0) target = $region25
    $region24: #{recurrent_net_forward.1} parent=1 // pred_region
      %53 = dma.done [#allocation6], 1280
    $region25: #{recurrent_net_forward.1} parent=1 // pred_fallthru
      _
    %v54 = vld [vmem:[#allocation5] sm:$0xff]
    %v55 = vld [vmem:[#allocation5 + $0x8] sm:$0xff]
    %v56 = vld [vmem:[#allocation5 + $0x10] sm:$0xff]
    %v57 = vld [vmem:[#allocation5 + $0x18] sm:$0xff]
    %v58 = vld [vmem:[#allocation5 + $0x20] sm:$0xff]
    %v59 = vld [vmem:[#allocation5 + $0x28] sm:$0x1]
    %v60 = vld [vmem:[#allocation2] sm:$0xff]
    %v61 = vlaneseq
    %v62 = vshrl.u32 %v61, 7
    %v63 = vsub.s32 0, %v62
    %v64 = vrot.slane %v59, %v63
    %vm65 = vcmask 64512
    %v67 = vsel %vm65, %v60, 0
    %69 = vmatprep.subr.mxu0 0.0
    %70 = vmatpush1.msra.mxu0 %v54
    %71 = vmatprep.subr.mxu0 0.0
    %72 = vmatpush1.msra.mxu0 0.0
    %73 = vmatprep.subr.mxu0 0.0
    %74 = vmatpush1.msra.mxu0 0.0
    %75 = vmatprep.subr.mxu0 0.0
    %76 = vmatpush1.msra.mxu0 0.0
    %77 = vmatprep.subr.mxu0 0.0
    %78 = vmatpush1.msra.mxu0 0.0
    %79 = vmatprep.subr.mxu0 0.0
    %80 = vmatpush1.msra.mxu0 0.0
    %81 = vmatprep.subr.mxu0 0.0
    %82 = vmatpush1.msra.mxu0 0.0
    %83 = vmatprep.subr.mxu0 0.0
    %84 = vmatpush1.msra.mxu0 0.0
    %85 = vmatprep.subr.mxu0 0.0
    %86 = vmatpush1.msra.mxu0 0.0
    %87 = vmatprep.subr.mxu0 0.0
    %88 = vmatpush1.msra.mxu0 0.0
    %89 = vmatprep.subr.mxu0 0.0
    %90 = vmatpush1.msra.mxu0 0.0
    %91 = vmatprep.subr.mxu0 0.0
    %92 = vmatpush1.msra.mxu0 0.0
    %93 = vmatprep.subr.mxu0 0.0
    %94 = vmatpush1.msra.mxu0 0.0
    %95 = vmatprep.subr.mxu0 0.0
    %96 = vmatpush1.msra.mxu0 0.0
    %97 = vmatprep.subr.mxu0 0.0
    %98 = vmatpush1.msra.mxu0 0.0
    %99 = vmatprep.subr.mxu0 0.0
    %100 = vmatpush1.msra.mxu0 0.0
    %101 = vmatprep.subr.mxu0 0.0
    %102 = vmatpush1.msra.mxu0 0.0
    %103 = vmatprep.subr.mxu0 0.0
    %104 = vmatpush1.msra.mxu0 0.0
    %105 = vmatprep.subr.mxu0 0.0
    %106 = vmatpush1.msra.mxu0 0.0
    %107 = vmatprep.subr.mxu0 0.0
    %108 = vmatpush1.msra.mxu0 0.0
    %109 = vmatprep.subr.mxu0 0.0
    %110 = vmatpush1.msra.mxu0 0.0
    %111 = vmatprep.subr.mxu0 0.0
    %112 = vmatpush1.msra.mxu0 0.0
    %113 = vmatprep.subr.mxu0 0.0
    %114 = vmatpush1.msra.mxu0 0.0
    %115 = vmatprep.subr.mxu0 0.0
    %116 = vmatpush1.msra.mxu0 0.0
    %117 = vmatprep.subr.mxu0 0.0
    %118 = vmatpush1.msra.mxu0 0.0
    %119 = vmatprep.subr.mxu0 0.0
    %120 = vmatpush1.msra.mxu0 0.0
    %121 = vmatprep.subr.mxu0 0.0
    %122 = vmatpush1.msra.mxu0 0.0
    %123 = vmatprep.subr.mxu0 0.0
    %124 = vmatpush1.msra.mxu0 0.0
    %125 = vmatprep.subr.mxu0 0.0
    %126 = vmatpush1.msra.mxu0 0.0
    %127 = vmatprep.subr.mxu0 0.0
    %128 = vmatpush1.msra.mxu0 0.0
    %129 = vmatprep.subr.mxu0 0.0
    %130 = vmatpush1.msra.mxu0 0.0
    %131 = vmatprep.subr.mxu0 0.0
    %132 = vmatpush1.msra.mxu0 0.0
    %133 = vmatprep.mubr.f32.mxu0 0.0
    %134 = vmatmul.mubr.f32.gmra.mrb[0].mxu0 %v67
    %v135 = vpop.f32.mrb[0].mxu0
    %v136 = vadd.f32 %v64, %v135
    %v137 = vpop.f32.mrb[0].mxu0
    %138 = vdwg.mxu0
    %vm139 = vcmask 261120
    %v141 = vsel %vm139, 0.0, 0
    %143 = vmatprep.subr.mxu0 0.0
    %144 = vmatpush1.msra.mxu0 %v55
    %145 = vmatprep.subr.mxu0 0.0
    %146 = vmatpush1.msra.mxu0 %v56
    %147 = vmatprep.subr.mxu0 0.0
    %148 = vmatpush1.msra.mxu0 %v57
    %149 = vmatprep.subr.mxu0 0.0
    %150 = vmatpush1.msra.mxu0 %v58
    %151 = vmatprep.subr.mxu0 0.0
    %152 = vmatpush1.msra.mxu0 0.0
    %153 = vmatprep.subr.mxu0 0.0
    %154 = vmatpush1.msra.mxu0 0.0
    %155 = vmatprep.subr.mxu0 0.0
    %156 = vmatpush1.msra.mxu0 0.0
    %157 = vmatprep.subr.mxu0 0.0
    %158 = vmatpush1.msra.mxu0 0.0
    %159 = vmatprep.subr.mxu0 0.0
    %160 = vmatpush1.msra.mxu0 0.0
    %161 = vmatprep.subr.mxu0 0.0
    %162 = vmatpush1.msra.mxu0 0.0
    %163 = vmatprep.subr.mxu0 0.0
    %164 = vmatpush1.msra.mxu0 0.0
    %165 = vmatprep.subr.mxu0 0.0
    %166 = vmatpush1.msra.mxu0 0.0
    %167 = vmatprep.subr.mxu0 0.0
    %168 = vmatpush1.msra.mxu0 0.0
    %169 = vmatprep.subr.mxu0 0.0
    %170 = vmatpush1.msra.mxu0 0.0
    %171 = vmatprep.subr.mxu0 0.0
    %172 = vmatpush1.msra.mxu0 0.0
    %173 = vmatprep.subr.mxu0 0.0
    %174 = vmatpush1.msra.mxu0 0.0
    %175 = vmatprep.subr.mxu0 0.0
    %176 = vmatpush1.msra.mxu0 0.0
    %177 = vmatprep.subr.mxu0 0.0
    %178 = vmatpush1.msra.mxu0 0.0
    %179 = vmatprep.subr.mxu0 0.0
    %180 = vmatpush1.msra.mxu0 0.0
    %181 = vmatprep.subr.mxu0 0.0
    %182 = vmatpush1.msra.mxu0 0.0
    %183 = vmatprep.subr.mxu0 0.0
    %184 = vmatpush1.msra.mxu0 0.0
    %185 = vmatprep.subr.mxu0 0.0
    %186 = vmatpush1.msra.mxu0 0.0
    %187 = vmatprep.subr.mxu0 0.0
    %188 = vmatpush1.msra.mxu0 0.0
    %189 = vmatprep.subr.mxu0 0.0
    %190 = vmatpush1.msra.mxu0 0.0
    %191 = vmatprep.subr.mxu0 0.0
    %192 = vmatpush1.msra.mxu0 0.0
    %193 = vmatprep.subr.mxu0 0.0
    %194 = vmatpush1.msra.mxu0 0.0
    %195 = vmatprep.subr.mxu0 0.0
    %196 = vmatpush1.msra.mxu0 0.0
    %197 = vmatprep.subr.mxu0 0.0
    %198 = vmatpush1.msra.mxu0 0.0
    %199 = vmatprep.subr.mxu0 0.0
    %200 = vmatpush1.msra.mxu0 0.0
    %201 = vmatprep.subr.mxu0 0.0
    %202 = vmatpush1.msra.mxu0 0.0
    %203 = vmatprep.subr.mxu0 0.0
    %204 = vmatpush1.msra.mxu0 0.0
    %205 = vmatprep.subr.mxu0 0.0
    %206 = vmatpush1.msra.mxu0 0.0
    %207 = vmatprep.mubr.f32.mxu0 0.0
    %208 = vmatmul.mubr.f32.gmra.mrb[0].mxu0 %v141
    %v209 = vpop.f32.mrb[0].mxu0
    %v210 = vadd.f32 0.0, %v209
    %v211 = vpop.f32.mrb[0].mxu0
    %212 = vdwg.mxu0
    %v213 = vadd.f32 %v136, %v210
    %v214 = vtanh.pop %v213
    %v215 = vmul.f32 %v214, 0.5
    %v216 = vadd.f32 %v215, 0.5
    %v217 = vmul.f32 %v216, 0.0
    %219 = vrot.lane.b32.xlu0 %v214, 32
    %v220 = vpop.permute.xlu0 %219
    %v222 = vmul.f32 %v216, %v220
    %224 = vrot.lane.b32.xlu0 %v222, 32
    %v225 = vpop.permute.xlu0 %224
    %v227 = vadd.f32 %v217, %v225
    %v228 = vtanh.pop %v227
    %230 = vrot.lane.b32.xlu0 %v228, 32
    %v231 = vpop.permute.xlu0 %230
    %v233 = vmul.f32 %v216, %v231
    %235 = vrot.lane.b32.xlu0 %v233, 64
    %v236 = vpop.permute.xlu0 %235
    %v237 = vsel %vm139, %v236, 0
    %239 = vmatprep.subr.mxu0 0.0
    %240 = vmatpush1.msra.mxu0 %v55
    %241 = vmatprep.subr.mxu0 0.0
    %242 = vmatpush1.msra.mxu0 %v56
    %243 = vmatprep.subr.mxu0 0.0
    %244 = vmatpush1.msra.mxu0 %v57
    %245 = vmatprep.subr.mxu0 0.0
    %246 = vmatpush1.msra.mxu0 %v58
    %247 = vmatprep.subr.mxu0 0.0
    %248 = vmatpush1.msra.mxu0 0.0
    %249 = vmatprep.subr.mxu0 0.0
    %250 = vmatpush1.msra.mxu0 0.0
    %251 = vmatprep.subr.mxu0 0.0
    %252 = vmatpush1.msra.mxu0 0.0
    %253 = vmatprep.subr.mxu0 0.0
    %254 = vmatpush1.msra.mxu0 0.0
    %255 = vmatprep.subr.mxu0 0.0
    %256 = vmatpush1.msra.mxu0 0.0
    %257 = vmatprep.subr.mxu0 0.0
    %258 = vmatpush1.msra.mxu0 0.0
    %259 = vmatprep.subr.mxu0 0.0
    %260 = vmatpush1.msra.mxu0 0.0
    %261 = vmatprep.subr.mxu0 0.0
    %262 = vmatpush1.msra.mxu0 0.0
    %263 = vmatprep.subr.mxu0 0.0
    %264 = vmatpush1.msra.mxu0 0.0
    %265 = vmatprep.subr.mxu0 0.0
    %266 = vmatpush1.msra.mxu0 0.0
    %267 = vmatprep.subr.mxu0 0.0
    %268 = vmatpush1.msra.mxu0 0.0
    %269 = vmatprep.subr.mxu0 0.0
    %270 = vmatpush1.msra.mxu0 0.0
    %271 = vmatprep.subr.mxu0 0.0
    %272 = vmatpush1.msra.mxu0 0.0
    %273 = vmatprep.subr.mxu0 0.0
    %274 = vmatpush1.msra.mxu0 0.0
    %275 = vmatprep.subr.mxu0 0.0
    %276 = vmatpush1.msra.mxu0 0.0
    %277 = vmatprep.subr.mxu0 0.0
    %278 = vmatpush1.msra.mxu0 0.0
    %279 = vmatprep.subr.mxu0 0.0
    %280 = vmatpush1.msra.mxu0 0.0
    %281 = vmatprep.subr.mxu0 0.0
    %282 = vmatpush1.msra.mxu0 0.0
    %283 = vmatprep.subr.mxu0 0.0
    %284 = vmatpush1.msra.mxu0 0.0
    %285 = vmatprep.subr.mxu0 0.0
    %286 = vmatpush1.msra.mxu0 0.0
    %287 = vmatprep.subr.mxu0 0.0
    %288 = vmatpush1.msra.mxu0 0.0
    %289 = vmatprep.subr.mxu0 0.0
    %290 = vmatpush1.msra.mxu0 0.0
    %291 = vmatprep.subr.mxu0 0.0
    %292 = vmatpush1.msra.mxu0 0.0
    %293 = vmatprep.subr.mxu0 0.0
    %294 = vmatpush1.msra.mxu0 0.0
    %295 = vmatprep.subr.mxu0 0.0
    %296 = vmatpush1.msra.mxu0 0.0
    %297 = vmatprep.subr.mxu0 0.0
    %298 = vmatpush1.msra.mxu0 0.0
    %299 = vmatprep.subr.mxu0 0.0
    %300 = vmatpush1.msra.mxu0 0.0
    %301 = vmatprep.subr.mxu0 0.0
    %302 = vmatpush1.msra.mxu0 0.0
    %303 = vmatprep.mubr.f32.mxu0 0.0
    %304 = vmatmul.mubr.f32.gmra.mrb[0].mxu0 %v237
    %v305 = vpop.f32.mrb[0].mxu0
    %v306 = vadd.f32 0.0, %v305
    %v307 = vpop.f32.mrb[0].mxu0
    %308 = vdwg.mxu0
    %v310 = vrot.slane %v306, 7
    %v312 = vadd.f32 %v136, %v310
    %v313 = vtanh.pop %v312
    %v314 = vmul.f32 %v313, 0.5
    %v315 = vadd.f32 %v314, 0.5
    %v317 = vrot.slane %v227, 7
    %v319 = vmul.f32 %v315, %v317
    %321 = vrot.lane.b32.xlu0 %v313, 32
    %v322 = vpop.permute.xlu0 %321
    %v324 = vmul.f32 %v315, %v322
    %326 = vrot.lane.b32.xlu0 %v324, 32
    %v327 = vpop.permute.xlu0 %326
    %v329 = vadd.f32 %v319, %v327
    %v330 = vtanh.pop %v329
    %332 = vrot.lane.b32.xlu0 %v330, 32
    %v333 = vpop.permute.xlu0 %332
    %v335 = vmul.f32 %v315, %v333
    %v337 = vrot.slane %v335, 1
    %338 = vrot.lane.b32.xlu0 %v337, 64
    %v339 = vpop.permute.xlu0 %338
    %v340 = vsel %vm139, %v339, 0
    %342 = vmatprep.subr.mxu0 0.0
    %343 = vmatpush1.msra.mxu0 %v55
    %344 = vmatprep.subr.mxu0 0.0
    %345 = vmatpush1.msra.mxu0 %v56
    %346 = vmatprep.subr.mxu0 0.0
    %347 = vmatpush1.msra.mxu0 %v57
    %348 = vmatprep.subr.mxu0 0.0
    %349 = vmatpush1.msra.mxu0 %v58
    %350 = vmatprep.subr.mxu0 0.0
    %351 = vmatpush1.msra.mxu0 0.0
    %352 = vmatprep.subr.mxu0 0.0
    %353 = vmatpush1.msra.mxu0 0.0
    %354 = vmatprep.subr.mxu0 0.0
    %355 = vmatpush1.msra.mxu0 0.0
    %356 = vmatprep.subr.mxu0 0.0
    %357 = vmatpush1.msra.mxu0 0.0
    %358 = vmatprep.subr.mxu0 0.0
    %359 = vmatpush1.msra.mxu0 0.0
    %360 = vmatprep.subr.mxu0 0.0
    %361 = vmatpush1.msra.mxu0 0.0
    %362 = vmatprep.subr.mxu0 0.0
    %363 = vmatpush1.msra.mxu0 0.0
    %364 = vmatprep.subr.mxu0 0.0
    %365 = vmatpush1.msra.mxu0 0.0
    %366 = vmatprep.subr.mxu0 0.0
    %367 = vmatpush1.msra.mxu0 0.0
    %368 = vmatprep.subr.mxu0 0.0
    %369 = vmatpush1.msra.mxu0 0.0
    %370 = vmatprep.subr.mxu0 0.0
    %371 = vmatpush1.msra.mxu0 0.0
    %372 = vmatprep.subr.mxu0 0.0
    %373 = vmatpush1.msra.mxu0 0.0
    %374 = vmatprep.subr.mxu0 0.0
    %375 = vmatpush1.msra.mxu0 0.0
    %376 = vmatprep.subr.mxu0 0.0
    %377 = vmatpush1.msra.mxu0 0.0
    %378 = vmatprep.subr.mxu0 0.0
    %379 = vmatpush1.msra.mxu0 0.0
    %380 = vmatprep.subr.mxu0 0.0
    %381 = vmatpush1.msra.mxu0 0.0
    %382 = vmatprep.subr.mxu0 0.0
    %383 = vmatpush1.msra.mxu0 0.0
    %384 = vmatprep.subr.mxu0 0.0
    %385 = vmatpush1.msra.mxu0 0.0
    %386 = vmatprep.subr.mxu0 0.0
    %387 = vmatpush1.msra.mxu0 0.0
    %388 = vmatprep.subr.mxu0 0.0
    %389 = vmatpush1.msra.mxu0 0.0
    %390 = vmatprep.subr.mxu0 0.0
    %391 = vmatpush1.msra.mxu0 0.0
    %392 = vmatprep.subr.mxu0 0.0
    %393 = vmatpush1.msra.mxu0 0.0
    %394 = vmatprep.subr.mxu0 0.0
    %395 = vmatpush1.msra.mxu0 0.0
    %396 = vmatprep.subr.mxu0 0.0
    %397 = vmatpush1.msra.mxu0 0.0
    %398 = vmatprep.subr.mxu0 0.0
    %399 = vmatpush1.msra.mxu0 0.0
    %400 = vmatprep.subr.mxu0 0.0
    %401 = vmatpush1.msra.mxu0 0.0
    %402 = vmatprep.subr.mxu0 0.0
    %403 = vmatpush1.msra.mxu0 0.0
    %404 = vmatprep.subr.mxu0 0.0
    %405 = vmatpush1.msra.mxu0 0.0
    %406 = vmatprep.mubr.f32.mxu0 0.0
    %407 = vmatmul.mubr.f32.gmra.mrb[0].mxu0 %v340
    %v408 = vpop.f32.mrb[0].mxu0
    %v409 = vadd.f32 0.0, %v408
    %v410 = vpop.f32.mrb[0].mxu0
    %411 = vdwg.mxu0
    %v413 = vrot.slane %v409, 6
    %v415 = vadd.f32 %v136, %v413
    %v416 = vtanh.pop %v415
    %v417 = vmul.f32 %v416, 0.5
    %v418 = vadd.f32 %v417, 0.5
    %v420 = vrot.slane %v329, 7
    %v422 = vmul.f32 %v418, %v420
    %424 = vrot.lane.b32.xlu0 %v416, 32
    %v425 = vpop.permute.xlu0 %424
    %v427 = vmul.f32 %v418, %v425
    %429 = vrot.lane.b32.xlu0 %v427, 32
    %v430 = vpop.permute.xlu0 %429
    %v432 = vadd.f32 %v422, %v430
    %v433 = vtanh.pop %v432
    %435 = vrot.lane.b32.xlu0 %v433, 32
    %v436 = vpop.permute.xlu0 %435
    %v438 = vmul.f32 %v418, %v436
    %v440 = vrot.slane %v438, 2
    %441 = vrot.lane.b32.xlu0 %v440, 64
    %v442 = vpop.permute.xlu0 %441
    %v443 = vsel %vm139, %v442, 0
    %445 = vmatprep.subr.mxu0 0.0
    %446 = vmatpush1.msra.mxu0 %v55
    %447 = vmatprep.subr.mxu0 0.0
    %448 = vmatpush1.msra.mxu0 %v56
    %449 = vmatprep.subr.mxu0 0.0
    %450 = vmatpush1.msra.mxu0 %v57
    %451 = vmatprep.subr.mxu0 0.0
    %452 = vmatpush1.msra.mxu0 %v58
    %453 = vmatprep.subr.mxu0 0.0
    %454 = vmatpush1.msra.mxu0 0.0
    %455 = vmatprep.subr.mxu0 0.0
    %456 = vmatpush1.msra.mxu0 0.0
    %457 = vmatprep.subr.mxu0 0.0
    %458 = vmatpush1.msra.mxu0 0.0
    %459 = vmatprep.subr.mxu0 0.0
    %460 = vmatpush1.msra.mxu0 0.0
    %461 = vmatprep.subr.mxu0 0.0
    %462 = vmatpush1.msra.mxu0 0.0
    %463 = vmatprep.subr.mxu0 0.0
    %464 = vmatpush1.msra.mxu0 0.0
    %465 = vmatprep.subr.mxu0 0.0
    %466 = vmatpush1.msra.mxu0 0.0
    %467 = vmatprep.subr.mxu0 0.0
    %468 = vmatpush1.msra.mxu0 0.0
    %469 = vmatprep.subr.mxu0 0.0
    %470 = vmatpush1.msra.mxu0 0.0
    %471 = vmatprep.subr.mxu0 0.0
    %472 = vmatpush1.msra.mxu0 0.0
    %473 = vmatprep.subr.mxu0 0.0
    %474 = vmatpush1.msra.mxu0 0.0
    %475 = vmatprep.subr.mxu0 0.0
    %476 = vmatpush1.msra.mxu0 0.0
    %477 = vmatprep.subr.mxu0 0.0
    %478 = vmatpush1.msra.mxu0 0.0
    %479 = vmatprep.subr.mxu0 0.0
    %480 = vmatpush1.msra.mxu0 0.0
    %481 = vmatprep.subr.mxu0 0.0
    %482 = vmatpush1.msra.mxu0 0.0
    %483 = vmatprep.subr.mxu0 0.0
    %484 = vmatpush1.msra.mxu0 0.0
    %485 = vmatprep.subr.mxu0 0.0
    %486 = vmatpush1.msra.mxu0 0.0
    %487 = vmatprep.subr.mxu0 0.0
    %488 = vmatpush1.msra.mxu0 0.0
    %489 = vmatprep.subr.mxu0 0.0
    %490 = vmatpush1.msra.mxu0 0.0
    %491 = vmatprep.subr.mxu0 0.0
    %492 = vmatpush1.msra.mxu0 0.0
    %493 = vmatprep.subr.mxu0 0.0
    %494 = vmatpush1.msra.mxu0 0.0
    %495 = vmatprep.subr.mxu0 0.0
    %496 = vmatpush1.msra.mxu0 0.0
    %497 = vmatprep.subr.mxu0 0.0
    %498 = vmatpush1.msra.mxu0 0.0
    %499 = vmatprep.subr.mxu0 0.0
    %500 = vmatpush1.msra.mxu0 0.0
    %501 = vmatprep.subr.mxu0 0.0
    %502 = vmatpush1.msra.mxu0 0.0
    %503 = vmatprep.subr.mxu0 0.0
    %504 = vmatpush1.msra.mxu0 0.0
    %505 = vmatprep.subr.mxu0 0.0
    %506 = vmatpush1.msra.mxu0 0.0
    %507 = vmatprep.subr.mxu0 0.0
    %508 = vmatpush1.msra.mxu0 0.0
    %509 = vmatprep.mubr.f32.mxu0 0.0
    %510 = vmatmul.mubr.f32.gmra.mrb[0].mxu0 %v443
    %v511 = vpop.f32.mrb[0].mxu0
    %v512 = vadd.f32 0.0, %v511
    %v513 = vpop.f32.mrb[0].mxu0
    %514 = vdwg.mxu0
    %v516 = vrot.slane %v512, 5
    %v518 = vadd.f32 %v136, %v516
    %v519 = vtanh.pop %v518
    %v520 = vmul.f32 %v519, 0.5
    %v521 = vadd.f32 %v520, 0.5
    %v523 = vrot.slane %v432, 7
    %v525 = vmul.f32 %v521, %v523
    %527 = vrot.lane.b32.xlu0 %v519, 32
    %v528 = vpop.permute.xlu0 %527
    %v530 = vmul.f32 %v521, %v528
    %532 = vrot.lane.b32.xlu0 %v530, 32
    %v533 = vpop.permute.xlu0 %532
    %v535 = vadd.f32 %v525, %v533
    %v536 = vtanh.pop %v535
    %538 = vrot.lane.b32.xlu0 %v536, 32
    %v539 = vpop.permute.xlu0 %538
    %v541 = vmul.f32 %v521, %v539
    %v543 = vrot.slane %v541, 3
    %544 = vrot.lane.b32.xlu0 %v543, 64
    %v545 = vpop.permute.xlu0 %544
    %v546 = vsel %vm139, %v545, 0
    %548 = vmatprep.subr.mxu0 0.0
    %549 = vmatpush1.msra.mxu0 %v55
    %550 = vmatprep.subr.mxu0 0.0
    %551 = vmatpush1.msra.mxu0 %v56
    %552 = vmatprep.subr.mxu0 0.0
    %553 = vmatpush1.msra.mxu0 %v57
    %554 = vmatprep.subr.mxu0 0.0
    %555 = vmatpush1.msra.mxu0 %v58
    %556 = vmatprep.subr.mxu0 0.0
    %557 = vmatpush1.msra.mxu0 0.0
    %558 = vmatprep.subr.mxu0 0.0
    %559 = vmatpush1.msra.mxu0 0.0
    %560 = vmatprep.subr.mxu0 0.0
    %561 = vmatpush1.msra.mxu0 0.0
    %562 = vmatprep.subr.mxu0 0.0
    %563 = vmatpush1.msra.mxu0 0.0
    %564 = vmatprep.subr.mxu0 0.0
    %565 = vmatpush1.msra.mxu0 0.0
    %566 = vmatprep.subr.mxu0 0.0
    %567 = vmatpush1.msra.mxu0 0.0
    %568 = vmatprep.subr.mxu0 0.0
    %569 = vmatpush1.msra.mxu0 0.0
    %570 = vmatprep.subr.mxu0 0.0
    %571 = vmatpush1.msra.mxu0 0.0
    %572 = vmatprep.subr.mxu0 0.0
    %573 = vmatpush1.msra.mxu0 0.0
    %574 = vmatprep.subr.mxu0 0.0
    %575 = vmatpush1.msra.mxu0 0.0
    %576 = vmatprep.subr.mxu0 0.0
    %577 = vmatpush1.msra.mxu0 0.0
    %578 = vmatprep.subr.mxu0 0.0
    %579 = vmatpush1.msra.mxu0 0.0
    %580 = vmatprep.subr.mxu0 0.0
    %581 = vmatpush1.msra.mxu0 0.0
    %582 = vmatprep.subr.mxu0 0.0
    %583 = vmatpush1.msra.mxu0 0.0
    %584 = vmatprep.subr.mxu0 0.0
    %585 = vmatpush1.msra.mxu0 0.0
    %586 = vmatprep.subr.mxu0 0.0
    %587 = vmatpush1.msra.mxu0 0.0
    %588 = vmatprep.subr.mxu0 0.0
    %589 = vmatpush1.msra.mxu0 0.0
    %590 = vmatprep.subr.mxu0 0.0
    %591 = vmatpush1.msra.mxu0 0.0
    %592 = vmatprep.subr.mxu0 0.0
    %593 = vmatpush1.msra.mxu0 0.0
    %594 = vmatprep.subr.mxu0 0.0
    %595 = vmatpush1.msra.mxu0 0.0
    %596 = vmatprep.subr.mxu0 0.0
    %597 = vmatpush1.msra.mxu0 0.0
    %598 = vmatprep.subr.mxu0 0.0
    %599 = vmatpush1.msra.mxu0 0.0
    %600 = vmatprep.subr.mxu0 0.0
    %601 = vmatpush1.msra.mxu0 0.0
    %602 = vmatprep.subr.mxu0 0.0
    %603 = vmatpush1.msra.mxu0 0.0
    %604 = vmatprep.subr.mxu0 0.0
    %605 = vmatpush1.msra.mxu0 0.0
    %606 = vmatprep.subr.mxu0 0.0
    %607 = vmatpush1.msra.mxu0 0.0
    %608 = vmatprep.subr.mxu0 0.0
    %609 = vmatpush1.msra.mxu0 0.0
    %610 = vmatprep.subr.mxu0 0.0
    %611 = vmatpush1.msra.mxu0 0.0
    %612 = vmatprep.mubr.f32.mxu0 0.0
    %613 = vmatmul.mubr.f32.gmra.mrb[0].mxu0 %v546
    %v614 = vpop.f32.mrb[0].mxu0
    %v615 = vadd.f32 0.0, %v614
    %v616 = vpop.f32.mrb[0].mxu0
    %617 = vdwg.mxu0
    %v619 = vrot.slane %v615, 4
    %v621 = vadd.f32 %v136, %v619
    %v622 = vtanh.pop %v621
    %v623 = vmul.f32 %v622, 0.5
    %v624 = vadd.f32 %v623, 0.5
    %v626 = vrot.slane %v535, 7
    %v628 = vmul.f32 %v624, %v626
    %630 = vrot.lane.b32.xlu0 %v622, 32
    %v631 = vpop.permute.xlu0 %630
    %v633 = vmul.f32 %v624, %v631
    %635 = vrot.lane.b32.xlu0 %v633, 32
    %v636 = vpop.permute.xlu0 %635
    %v638 = vadd.f32 %v628, %v636
    %v639 = vtanh.pop %v638
    %641 = vrot.lane.b32.xlu0 %v639, 32
    %v642 = vpop.permute.xlu0 %641
    %v644 = vmul.f32 %v624, %v642
    %v646 = vrot.slane %v644, 4
    %647 = vrot.lane.b32.xlu0 %v646, 64
    %v648 = vpop.permute.xlu0 %647
    %v649 = vsel %vm139, %v648, 0
    %651 = vmatprep.subr.mxu0 0.0
    %652 = vmatpush1.msra.mxu0 %v55
    %653 = vmatprep.subr.mxu0 0.0
    %654 = vmatpush1.msra.mxu0 %v56
    %655 = vmatprep.subr.mxu0 0.0
    %656 = vmatpush1.msra.mxu0 %v57
    %657 = vmatprep.subr.mxu0 0.0
    %658 = vmatpush1.msra.mxu0 %v58
    %659 = vmatprep.subr.mxu0 0.0
    %660 = vmatpush1.msra.mxu0 0.0
    %661 = vmatprep.subr.mxu0 0.0
    %662 = vmatpush1.msra.mxu0 0.0
    %663 = vmatprep.subr.mxu0 0.0
    %664 = vmatpush1.msra.mxu0 0.0
    %665 = vmatprep.subr.mxu0 0.0
    %666 = vmatpush1.msra.mxu0 0.0
    %667 = vmatprep.subr.mxu0 0.0
    %668 = vmatpush1.msra.mxu0 0.0
    %669 = vmatprep.subr.mxu0 0.0
    %670 = vmatpush1.msra.mxu0 0.0
    %671 = vmatprep.subr.mxu0 0.0
    %672 = vmatpush1.msra.mxu0 0.0
    %673 = vmatprep.subr.mxu0 0.0
    %674 = vmatpush1.msra.mxu0 0.0
    %675 = vmatprep.subr.mxu0 0.0
    %676 = vmatpush1.msra.mxu0 0.0
    %677 = vmatprep.subr.mxu0 0.0
    %678 = vmatpush1.msra.mxu0 0.0
    %679 = vmatprep.subr.mxu0 0.0
    %680 = vmatpush1.msra.mxu0 0.0
    %681 = vmatprep.subr.mxu0 0.0
    %682 = vmatpush1.msra.mxu0 0.0
    %683 = vmatprep.subr.mxu0 0.0
    %684 = vmatpush1.msra.mxu0 0.0
    %685 = vmatprep.subr.mxu0 0.0
    %686 = vmatpush1.msra.mxu0 0.0
    %687 = vmatprep.subr.mxu0 0.0
    %688 = vmatpush1.msra.mxu0 0.0
    %689 = vmatprep.subr.mxu0 0.0
    %690 = vmatpush1.msra.mxu0 0.0
    %691 = vmatprep.subr.mxu0 0.0
    %692 = vmatpush1.msra.mxu0 0.0
    %693 = vmatprep.subr.mxu0 0.0
    %694 = vmatpush1.msra.mxu0 0.0
    %695 = vmatprep.subr.mxu0 0.0
    %696 = vmatpush1.msra.mxu0 0.0
    %697 = vmatprep.subr.mxu0 0.0
    %698 = vmatpush1.msra.mxu0 0.0
    %699 = vmatprep.subr.mxu0 0.0
    %700 = vmatpush1.msra.mxu0 0.0
    %701 = vmatprep.subr.mxu0 0.0
    %702 = vmatpush1.msra.mxu0 0.0
    %703 = vmatprep.subr.mxu0 0.0
    %704 = vmatpush1.msra.mxu0 0.0
    %705 = vmatprep.subr.mxu0 0.0
    %706 = vmatpush1.msra.mxu0 0.0
    %707 = vmatprep.subr.mxu0 0.0
    %708 = vmatpush1.msra.mxu0 0.0
    %709 = vmatprep.subr.mxu0 0.0
    %710 = vmatpush1.msra.mxu0 0.0
    %711 = vmatprep.subr.mxu0 0.0
    %712 = vmatpush1.msra.mxu0 0.0
    %713 = vmatprep.subr.mxu0 0.0
    %714 = vmatpush1.msra.mxu0 0.0
    %715 = vmatprep.mubr.f32.mxu0 0.0
    %716 = vmatmul.mubr.f32.gmra.mrb[0].mxu0 %v649
    %v717 = vpop.f32.mrb[0].mxu0
    %v718 = vadd.f32 0.0, %v717
    %v719 = vpop.f32.mrb[0].mxu0
    %720 = vdwg.mxu0
    %v722 = vrot.slane %v718, 3
    %v724 = vadd.f32 %v136, %v722
    %v725 = vtanh.pop %v724
    %v726 = vmul.f32 %v725, 0.5
    %v727 = vadd.f32 %v726, 0.5
    %v729 = vrot.slane %v638, 7
    %v731 = vmul.f32 %v727, %v729
    %733 = vrot.lane.b32.xlu0 %v725, 32
    %v734 = vpop.permute.xlu0 %733
    %v736 = vmul.f32 %v727, %v734
    %738 = vrot.lane.b32.xlu0 %v736, 32
    %v739 = vpop.permute.xlu0 %738
    %v741 = vadd.f32 %v731, %v739
    %v742 = vtanh.pop %v741
    %744 = vrot.lane.b32.xlu0 %v742, 32
    %v745 = vpop.permute.xlu0 %744
    %v747 = vmul.f32 %v727, %v745
    %v749 = vrot.slane %v747, 5
    %750 = vrot.lane.b32.xlu0 %v749, 64
    %v751 = vpop.permute.xlu0 %750
    %v752 = vsel %vm139, %v751, 0
    %754 = vmatprep.subr.mxu0 0.0
    %755 = vmatpush1.msra.mxu0 %v55
    %756 = vmatprep.subr.mxu0 0.0
    %757 = vmatpush1.msra.mxu0 %v56
    %758 = vmatprep.subr.mxu0 0.0
    %759 = vmatpush1.msra.mxu0 %v57
    %760 = vmatprep.subr.mxu0 0.0
    %761 = vmatpush1.msra.mxu0 %v58
    %762 = vmatprep.subr.mxu0 0.0
    %763 = vmatpush1.msra.mxu0 0.0
    %764 = vmatprep.subr.mxu0 0.0
    %765 = vmatpush1.msra.mxu0 0.0
    %766 = vmatprep.subr.mxu0 0.0
    %767 = vmatpush1.msra.mxu0 0.0
    %768 = vmatprep.subr.mxu0 0.0
    %769 = vmatpush1.msra.mxu0 0.0
    %770 = vmatprep.subr.mxu0 0.0
    %771 = vmatpush1.msra.mxu0 0.0
    %772 = vmatprep.subr.mxu0 0.0
    %773 = vmatpush1.msra.mxu0 0.0
    %774 = vmatprep.subr.mxu0 0.0
    %775 = vmatpush1.msra.mxu0 0.0
    %776 = vmatprep.subr.mxu0 0.0
    %777 = vmatpush1.msra.mxu0 0.0
    %778 = vmatprep.subr.mxu0 0.0
    %779 = vmatpush1.msra.mxu0 0.0
    %780 = vmatprep.subr.mxu0 0.0
    %781 = vmatpush1.msra.mxu0 0.0
    %782 = vmatprep.subr.mxu0 0.0
    %783 = vmatpush1.msra.mxu0 0.0
    %784 = vmatprep.subr.mxu0 0.0
    %785 = vmatpush1.msra.mxu0 0.0
    %786 = vmatprep.subr.mxu0 0.0
    %787 = vmatpush1.msra.mxu0 0.0
    %788 = vmatprep.subr.mxu0 0.0
    %789 = vmatpush1.msra.mxu0 0.0
    %790 = vmatprep.subr.mxu0 0.0
    %791 = vmatpush1.msra.mxu0 0.0
    %792 = vmatprep.subr.mxu0 0.0
    %793 = vmatpush1.msra.mxu0 0.0
    %794 = vmatprep.subr.mxu0 0.0
    %795 = vmatpush1.msra.mxu0 0.0
    %796 = vmatprep.subr.mxu0 0.0
    %797 = vmatpush1.msra.mxu0 0.0
    %798 = vmatprep.subr.mxu0 0.0
    %799 = vmatpush1.msra.mxu0 0.0
    %800 = vmatprep.subr.mxu0 0.0
    %801 = vmatpush1.msra.mxu0 0.0
    %802 = vmatprep.subr.mxu0 0.0
    %803 = vmatpush1.msra.mxu0 0.0
    %804 = vmatprep.subr.mxu0 0.0
    %805 = vmatpush1.msra.mxu0 0.0
    %806 = vmatprep.subr.mxu0 0.0
    %807 = vmatpush1.msra.mxu0 0.0
    %808 = vmatprep.subr.mxu0 0.0
    %809 = vmatpush1.msra.mxu0 0.0
    %810 = vmatprep.subr.mxu0 0.0
    %811 = vmatpush1.msra.mxu0 0.0
    %812 = vmatprep.subr.mxu0 0.0
    %813 = vmatpush1.msra.mxu0 0.0
    %814 = vmatprep.subr.mxu0 0.0
    %815 = vmatpush1.msra.mxu0 0.0
    %816 = vmatprep.subr.mxu0 0.0
    %817 = vmatpush1.msra.mxu0 0.0
    %818 = vmatprep.mubr.f32.mxu0 0.0
    %819 = vmatmul.mubr.f32.gmra.mrb[0].mxu0 %v752
    %v820 = vpop.f32.mrb[0].mxu0
    %v821 = vadd.f32 0.0, %v820
    %v822 = vpop.f32.mrb[0].mxu0
    %823 = vdwg.mxu0
    %v825 = vrot.slane %v821, 2
    %v827 = vadd.f32 %v136, %v825
    %v828 = vtanh.pop %v827
    %v829 = vmul.f32 %v828, 0.5
    %v830 = vadd.f32 %v829, 0.5
    %v832 = vrot.slane %v741, 7
    %v834 = vmul.f32 %v830, %v832
    %836 = vrot.lane.b32.xlu0 %v828, 32
    %v837 = vpop.permute.xlu0 %836
    %v839 = vmul.f32 %v830, %v837
    %841 = vrot.lane.b32.xlu0 %v839, 32
    %v842 = vpop.permute.xlu0 %841
    %v844 = vadd.f32 %v834, %v842
    %v845 = vtanh.pop %v844
    %847 = vrot.lane.b32.xlu0 %v845, 32
    %v848 = vpop.permute.xlu0 %847
    %v850 = vmul.f32 %v830, %v848
    %v852 = vrot.slane %v850, 6
    %853 = vrot.lane.b32.xlu0 %v852, 64
    %v854 = vpop.permute.xlu0 %853
    %v855 = vsel %vm139, %v854, 0
    %857 = vmatprep.subr.mxu0 0.0
    %858 = vmatpush1.msra.mxu0 %v55
    %859 = vmatprep.subr.mxu0 0.0
    %860 = vmatpush1.msra.mxu0 %v56
    %861 = vmatprep.subr.mxu0 0.0
    %862 = vmatpush1.msra.mxu0 %v57
    %863 = vmatprep.subr.mxu0 0.0
    %864 = vmatpush1.msra.mxu0 %v58
    %865 = vmatprep.subr.mxu0 0.0
    %866 = vmatpush1.msra.mxu0 0.0
    %867 = vmatprep.subr.mxu0 0.0
    %868 = vmatpush1.msra.mxu0 0.0
    %869 = vmatprep.subr.mxu0 0.0
    %870 = vmatpush1.msra.mxu0 0.0
    %871 = vmatprep.subr.mxu0 0.0
    %872 = vmatpush1.msra.mxu0 0.0
    %873 = vmatprep.subr.mxu0 0.0
    %874 = vmatpush1.msra.mxu0 0.0
    %875 = vmatprep.subr.mxu0 0.0
    %876 = vmatpush1.msra.mxu0 0.0
    %877 = vmatprep.subr.mxu0 0.0
    %878 = vmatpush1.msra.mxu0 0.0
    %879 = vmatprep.subr.mxu0 0.0
    %880 = vmatpush1.msra.mxu0 0.0
    %881 = vmatprep.subr.mxu0 0.0
    %882 = vmatpush1.msra.mxu0 0.0
    %883 = vmatprep.subr.mxu0 0.0
    %884 = vmatpush1.msra.mxu0 0.0
    %885 = vmatprep.subr.mxu0 0.0
    %886 = vmatpush1.msra.mxu0 0.0
    %887 = vmatprep.subr.mxu0 0.0
    %888 = vmatpush1.msra.mxu0 0.0
    %889 = vmatprep.subr.mxu0 0.0
    %890 = vmatpush1.msra.mxu0 0.0
    %891 = vmatprep.subr.mxu0 0.0
    %892 = vmatpush1.msra.mxu0 0.0
    %893 = vmatprep.subr.mxu0 0.0
    %894 = vmatpush1.msra.mxu0 0.0
    %895 = vmatprep.subr.mxu0 0.0
    %896 = vmatpush1.msra.mxu0 0.0
    %897 = vmatprep.subr.mxu0 0.0
    %898 = vmatpush1.msra.mxu0 0.0
    %899 = vmatprep.subr.mxu0 0.0
    %900 = vmatpush1.msra.mxu0 0.0
    %901 = vmatprep.subr.mxu0 0.0
    %902 = vmatpush1.msra.mxu0 0.0
    %903 = vmatprep.subr.mxu0 0.0
    %904 = vmatpush1.msra.mxu0 0.0
    %905 = vmatprep.subr.mxu0 0.0
    %906 = vmatpush1.msra.mxu0 0.0
    %907 = vmatprep.subr.mxu0 0.0
    %908 = vmatpush1.msra.mxu0 0.0
    %909 = vmatprep.subr.mxu0 0.0
    %910 = vmatpush1.msra.mxu0 0.0
    %911 = vmatprep.subr.mxu0 0.0
    %912 = vmatpush1.msra.mxu0 0.0
    %913 = vmatprep.subr.mxu0 0.0
    %914 = vmatpush1.msra.mxu0 0.0
    %915 = vmatprep.subr.mxu0 0.0
    %916 = vmatpush1.msra.mxu0 0.0
    %917 = vmatprep.subr.mxu0 0.0
    %918 = vmatpush1.msra.mxu0 0.0
    %919 = vmatprep.subr.mxu0 0.0
    %920 = vmatpush1.msra.mxu0 0.0
    %921 = vmatprep.mubr.f32.mxu0 0.0
    %922 = vmatmul.mubr.f32.gmra.mrb[0].mxu0 %v855
    %v923 = vpop.f32.mrb[0].mxu0
    %v924 = vadd.f32 0.0, %v923
    %v925 = vpop.f32.mrb[0].mxu0
    %926 = vdwg.mxu0
    %v928 = vrot.slane %v924, 1
    %v930 = vadd.f32 %v136, %v928
    %v931 = vtanh.pop %v930
    %v932 = vmul.f32 %v931, 0.5
    %v933 = vadd.f32 %v932, 0.5
    %v935 = vrot.slane %v844, 7
    %v937 = vmul.f32 %v933, %v935
    %939 = vrot.lane.b32.xlu0 %v931, 32
    %v940 = vpop.permute.xlu0 %939
    %v942 = vmul.f32 %v933, %v940
    %944 = vrot.lane.b32.xlu0 %v942, 32
    %v945 = vpop.permute.xlu0 %944
    %v947 = vadd.f32 %v937, %v945
    %v948 = vtanh.pop %v947
    %950 = vrot.lane.b32.xlu0 %v948, 32
    %v951 = vpop.permute.xlu0 %950
    %v953 = vmul.f32 %v933, %v951
    %v954 = vld [vmem:[#allocation7] sm:$0xff]
    %v955 = vld [vmem:[#allocation7 + $0x8] sm:$0xff]
    %v956 = vld [vmem:[#allocation7 + $0x10] sm:$0xff]
    %v957 = vld [vmem:[#allocation7 + $0x18] sm:$0xff]
    %v958 = vld [vmem:[#allocation7 + $0x20] sm:$0x1]
    %v959 = vld [vmem:[#allocation7 + $0x28] sm:$0xff]
    %v960 = vld [vmem:[#allocation7 + $0x30] sm:$0xff]
    %v961 = vld [vmem:[#allocation7 + $0x38] sm:$0xff]
    %v962 = vld [vmem:[#allocation7 + $0x40] sm:$0xff]
    %v963 = vld [vmem:[#allocation7 + $0x48] sm:$0x1]
    %v965 = vrot.slane %v953, 7
    %966 = vrot.lane.b32.xlu0 %v965, 64
    %v967 = vpop.permute.xlu0 %966
    %v968 = vsel %vm139, %v967, 0
    %970 = vmatprep.subr.mxu0 0.0
    %971 = vmatpush1.msra.mxu0 %v954
    %972 = vmatprep.subr.mxu0 0.0
    %973 = vmatpush1.msra.mxu0 %v955
    %974 = vmatprep.subr.mxu0 0.0
    %975 = vmatpush1.msra.mxu0 %v956
    %976 = vmatprep.subr.mxu0 0.0
    %977 = vmatpush1.msra.mxu0 %v957
    %978 = vmatprep.subr.mxu0 0.0
    %979 = vmatpush1.msra.mxu0 0.0
    %980 = vmatprep.subr.mxu0 0.0
    %981 = vmatpush1.msra.mxu0 0.0
    %982 = vmatprep.subr.mxu0 0.0
    %983 = vmatpush1.msra.mxu0 0.0
    %984 = vmatprep.subr.mxu0 0.0
    %985 = vmatpush1.msra.mxu0 0.0
    %986 = vmatprep.subr.mxu0 0.0
    %987 = vmatpush1.msra.mxu0 0.0
    %988 = vmatprep.subr.mxu0 0.0
    %989 = vmatpush1.msra.mxu0 0.0
    %990 = vmatprep.subr.mxu0 0.0
    %991 = vmatpush1.msra.mxu0 0.0
    %992 = vmatprep.subr.mxu0 0.0
    %993 = vmatpush1.msra.mxu0 0.0
    %994 = vmatprep.subr.mxu0 0.0
    %995 = vmatpush1.msra.mxu0 0.0
    %996 = vmatprep.subr.mxu0 0.0
    %997 = vmatpush1.msra.mxu0 0.0
    %998 = vmatprep.subr.mxu0 0.0
    %999 = vmatpush1.msra.mxu0 0.0
    %1000 = vmatprep.subr.mxu0 0.0
    %1001 = vmatpush1.msra.mxu0 0.0
    %1002 = vmatprep.subr.mxu0 0.0
    %1003 = vmatpush1.msra.mxu0 0.0
    %1004 = vmatprep.subr.mxu0 0.0
    %1005 = vmatpush1.msra.mxu0 0.0
    %1006 = vmatprep.subr.mxu0 0.0
    %1007 = vmatpush1.msra.mxu0 0.0
    %1008 = vmatprep.subr.mxu0 0.0
    %1009 = vmatpush1.msra.mxu0 0.0
    %1010 = vmatprep.subr.mxu0 0.0
    %1011 = vmatpush1.msra.mxu0 0.0
    %1012 = vmatprep.subr.mxu0 0.0
    %1013 = vmatpush1.msra.mxu0 0.0
    %1014 = vmatprep.subr.mxu0 0.0
    %1015 = vmatpush1.msra.mxu0 0.0
    %1016 = vmatprep.subr.mxu0 0.0
    %1017 = vmatpush1.msra.mxu0 0.0
    %1018 = vmatprep.subr.mxu0 0.0
    %1019 = vmatpush1.msra.mxu0 0.0
    %1020 = vmatprep.subr.mxu0 0.0
    %1021 = vmatpush1.msra.mxu0 0.0
    %1022 = vmatprep.subr.mxu0 0.0
    %1023 = vmatpush1.msra.mxu0 0.0
    %1024 = vmatprep.subr.mxu0 0.0
    %1025 = vmatpush1.msra.mxu0 0.0
    %1026 = vmatprep.subr.mxu0 0.0
    %1027 = vmatpush1.msra.mxu0 0.0
    %1028 = vmatprep.subr.mxu0 0.0
    %1029 = vmatpush1.msra.mxu0 0.0
    %1030 = vmatprep.subr.mxu0 0.0
    %1031 = vmatpush1.msra.mxu0 0.0
    %1032 = vmatprep.subr.mxu0 0.0
    %1033 = vmatpush1.msra.mxu0 0.0
    %1034 = vmatprep.mubr.f32.mxu0 0.0
    %1035 = vmatmul.mubr.f32.gmra.mrb[0].mxu0 %v968
    %v1036 = vpop.f32.mrb[0].mxu0
    %v1037 = vadd.f32 %v958, %v1036
    %v1038 = vpop.f32.mrb[0].mxu0
    %1039 = vdwg.mxu0
    %v1040 = vmax.f32 %v1037, 0.0
    %v1042 = vsel %vm139, %v1040, 0
    %1044 = vmatprep.subr.mxu0 0.0
    %1045 = vmatpush1.msra.mxu0 %v959
    %1046 = vmatprep.subr.mxu0 0.0
    %1047 = vmatpush1.msra.mxu0 %v960
    %1048 = vmatprep.subr.mxu0 0.0
    %1049 = vmatpush1.msra.mxu0 %v961
    %1050 = vmatprep.subr.mxu0 0.0
    %1051 = vmatpush1.msra.mxu0 %v962
    %1052 = vmatprep.subr.mxu0 0.0
    %1053 = vmatpush1.msra.mxu0 0.0
    %1054 = vmatprep.subr.mxu0 0.0
    %1055 = vmatpush1.msra.mxu0 0.0
    %1056 = vmatprep.subr.mxu0 0.0
    %1057 = vmatpush1.msra.mxu0 0.0
    %1058 = vmatprep.subr.mxu0 0.0
    %1059 = vmatpush1.msra.mxu0 0.0
    %1060 = vmatprep.subr.mxu0 0.0
    %1061 = vmatpush1.msra.mxu0 0.0
    %1062 = vmatprep.subr.mxu0 0.0
    %1063 = vmatpush1.msra.mxu0 0.0
    %1064 = vmatprep.subr.mxu0 0.0
    %1065 = vmatpush1.msra.mxu0 0.0
    %1066 = vmatprep.subr.mxu0 0.0
    %1067 = vmatpush1.msra.mxu0 0.0
    %1068 = vmatprep.subr.mxu0 0.0
    %1069 = vmatpush1.msra.mxu0 0.0
    %1070 = vmatprep.subr.mxu0 0.0
    %1071 = vmatpush1.msra.mxu0 0.0
    %1072 = vmatprep.subr.mxu0 0.0
    %1073 = vmatpush1.msra.mxu0 0.0
    %1074 = vmatprep.subr.mxu0 0.0
    %1075 = vmatpush1.msra.mxu0 0.0
    %1076 = vmatprep.subr.mxu0 0.0
    %1077 = vmatpush1.msra.mxu0 0.0
    %1078 = vmatprep.subr.mxu0 0.0
    %1079 = vmatpush1.msra.mxu0 0.0
    %1080 = vmatprep.subr.mxu0 0.0
    %1081 = vmatpush1.msra.mxu0 0.0
    %1082 = vmatprep.subr.mxu0 0.0
    %1083 = vmatpush1.msra.mxu0 0.0
    %1084 = vmatprep.subr.mxu0 0.0
    %1085 = vmatpush1.msra.mxu0 0.0
    %1086 = vmatprep.subr.mxu0 0.0
    %1087 = vmatpush1.msra.mxu0 0.0
    %1088 = vmatprep.subr.mxu0 0.0
    %1089 = vmatpush1.msra.mxu0 0.0
    %1090 = vmatprep.subr.mxu0 0.0
    %1091 = vmatpush1.msra.mxu0 0.0
    %1092 = vmatprep.subr.mxu0 0.0
    %1093 = vmatpush1.msra.mxu0 0.0
    %1094 = vmatprep.subr.mxu0 0.0
    %1095 = vmatpush1.msra.mxu0 0.0
    %1096 = vmatprep.subr.mxu0 0.0
    %1097 = vmatpush1.msra.mxu0 0.0
    %1098 = vmatprep.subr.mxu0 0.0
    %1099 = vmatpush1.msra.mxu0 0.0
    %1100 = vmatprep.subr.mxu0 0.0
    %1101 = vmatpush1.msra.mxu0 0.0
    %1102 = vmatprep.subr.mxu0 0.0
    %1103 = vmatpush1.msra.mxu0 0.0
    %1104 = vmatprep.subr.mxu0 0.0
    %1105 = vmatpush1.msra.mxu0 0.0
    %1106 = vmatprep.subr.mxu0 0.0
    %1107 = vmatpush1.msra.mxu0 0.0
    %1108 = vmatprep.mubr.f32.mxu0 0.0
    %1109 = vmatmul.mubr.f32.gmra.mrb[0].mxu0 %v1042
    %v1110 = vpop.f32.mrb[0].mxu0
    %v1111 = vadd.f32 %v963, %v1110
    %v1112 = vpop.f32.mrb[0].mxu0
    %1113 = vdwg.mxu0
    %vm1114 = vcmask 24576
    %1115 = vst.msk [vmem:[#allocation8] sm:$0x1] %vm1114, %v1111
    // Predicated region
    $region26: #{recurrent_net_forward.1} parent=1 // pred_check
      _
    $region27: #{recurrent_net_forward.1} parent=1 // pred_check_branch
      %1117 = sbr.rel (0) target = $region29
    $region28: #{recurrent_net_forward.1} parent=1 // pred_region
      %s1119 = ssub.s32 16, 16
      %1120 = vsyncadd [#allocation4], %s1119
      %s1122 = sshll.u32 [#allocation8], 4
      %s1123 = int_to_ptr.vmem [resolvable:$true] %s1122
      %1125 = dma.vmem_to_hbm [thread:$0]  %s1123, 16, %s3, [#allocation4]
    $region29: #{recurrent_net_forward.1} parent=1 // pred_fallthru
      _
    // Predicated region
    $region30: #{recurrent_net_forward.1} parent=1 // pred_check
      _
    $region31: #{recurrent_net_forward.1} parent=1 // pred_check_branch
      %1127 = sbr.rel (0) target = $region33
    $region32: #{recurrent_net_forward.1} parent=1 // pred_region
      %1128 = dma.done [#allocation4], 16
    $region33: #{recurrent_net_forward.1} parent=1 // pred_fallthru
      _
    %1129 = vsyncpa [#allocation3], 1
    %1130 = vsyncpa [#allocation6], 1
    %1131 = vsyncpa [#allocation4], 1

</llo_original>
